<compile_context>
chip_gen: v7x
topology: tpu7x:2x2x1
jax: 0.10.0
libtpu: 0.0.40
codegen_flags: <defaults>
</compile_context>

<pallas_src>
import functools

import jax
import jax.numpy as jnp
from jax import lax
from jax.experimental import pallas as pl
from jax.experimental.pallas import tpu as pltpu

EPS = 1e-5  # PyTorch GroupNorm default


def _round_up(x, m):
  return (x + m - 1) // m * m


def _vmem_capacity_bytes():
  try:
    return int(pltpu.get_tpu_info().vmem_capacity_bytes)
  except Exception:
    return 64 * 1024 * 1024  # conservative: v7x per-TensorCore VMEM


# ---------------------------------------------------------------------------
# Pass 1 (stats only): y = Wsub @ patches; per-row Welford across P tiles.
# Resident outputs: running per-row mean and M2 (sum of squared deviations).
# ---------------------------------------------------------------------------
def _stats_kernel(w_ref, patch_ref, mean_ref, m2_ref, *, tp, ps):
  t = pl.program_id(2)

  @pl.when(t == 0)
  def _init():
    mean_ref[...] = jnp.zeros_like(mean_ref)
    m2_ref[...] = jnp.zeros_like(m2_ref)

  # [TCR, Kdim] @ [Kdim, TP] -> [TCR, TP]   (bf16 in, f32 accumulate)
  y = jnp.dot(w_ref[...], patch_ref[0], preferred_element_type=jnp.float32)

  # lane-validity mask for the zero-padded tail of the spatial axis
  n_valid = jnp.minimum(tp, ps - t * tp)               # >= 1 by construction
  lane = lax.broadcasted_iota(jnp.int32, y.shape, 1)
  valid = lane < n_valid

  n_b = n_valid.astype(jnp.float32)
  sum_b = jnp.sum(jnp.where(valid, y, 0.0), axis=1, keepdims=True)   # [TCR,1]
  mean_b = sum_b / n_b
  d = jnp.where(valid, y - mean_b, 0.0)
  m2_b = jnp.sum(d * d, axis=1, keepdims=True)

  # Chan/Welford combine with the running per-row (mean, M2)
  n_a = (t * tp).astype(jnp.float32)   # earlier tiles are always full
  n_t = n_a + n_b
  mean_a = mean_ref[0]
  delta = mean_b - mean_a
  mean_ref[0] = mean_a + delta * (n_b / n_t)
  m2_ref[0] = m2_ref[0] + m2_b + delta * delta * (n_a * n_b / n_t)


# ---------------------------------------------------------------------------
# Pass 2: recompute conv matmul, fuse normalize + affine + ReLU, lane-dense
# stores; no y_raw read from HBM.
# ---------------------------------------------------------------------------
def _conv_norm_relu_kernel(w_ref, patch_ref, scale_ref, shift_ref, o_ref):
  y = jnp.dot(w_ref[...], patch_ref[0], preferred_element_type=jnp.float32)
  out = y * scale_ref[0] + shift_ref[0]                # scale/shift [TCR, 1]
  o_ref[0] = jnp.maximum(out, 0.0).astype(o_ref.dtype)


def deconv_gn_relu(x, weight, gamma, beta, *, stride=2, padding=1,
                   output_padding=1, group_channel=8, out_dtype=jnp.float32):
  """ConvTranspose2d(k,s,p,op,bias=False) -> GroupNorm -> ReLU.

  x: [N, Cin, H, W]; weight: [Cin, Cout, K, K] (PyTorch ConvTranspose2d layout).
  Returns [N, Cout, H_out, W_out] in `out_dtype` (f32 default, matching torch).
  """
  N, C_in, H, W = x.shape
  _, C_out, K, _ = weight.shape
  s = stride
  G = int(max(1, C_out / group_channel))               # as in the PyTorch module
  assert C_out % G == 0, "GroupNorm requires out_channels % num_groups == 0"
  GC = C_out // G

  H_out = (H - 1) * s - 2 * padding + K + output_padding
  W_out = (W - 1) * s - 2 * padding + K + output_padding
  if H_out % s != 0 or W_out % s != 0:
    # TODO(synk): parities with unequal extents (H_out % stride != 0) need
    # per-parity spatial sizes; the module defaults (k=3,s=2,p=1,op=1) always
    # give H_out == stride * H.
    raise NotImplementedError(
        "deconv_gn_relu: H_out/W_out must be divisible by stride "
        "(holds for kernel=3, stride=2, padding=1, output_padding=1).")
  Hs, Ws = H_out // s, W_out // s
  Ps = Hs * Ws                       # spatial positions per parity class
  Crows = s * s * C_out              # parity-major channel rows

  # ---- sub-pixel tap analysis: out[s*i+r, s*j+c] uses x[i+di, j+dj] ---------
  pad_lo = K - 1 - padding

  def _taps(par):
    res = []
    for k in range(K):
      t = par + k - pad_lo
      if t % s == 0:
        res.append((t // s, k))      # (input offset, kernel tap)
    return res

  row_taps = [_taps(r) for r in range(s)]
  col_taps = [_taps(c) for c in range(s)]
  di_all = [d for tl in row_taps for d, _ in tl]
  dj_all = [d for tl in col_taps for d, _ in tl]
  di_min, di_max = min(di_all), max(di_all)
  dj_min, dj_max = min(dj_all), max(dj_all)
  Dh, Dw = di_max - di_min + 1, dj_max - dj_min + 1
  Kdim = Dh * Dw * C_in

  # layout-friendly padded sizes (bf16 sublane packing = 16)
  Crows_p = _round_up(Crows, 16)
  Kdim_p = _round_up(Kdim, 16)

  # ---- spatial tile & VMEM budget (per-chip gate) ---------------------------
  usable = int(0.8 * _vmem_capacity_bytes())

  def _step_bytes(tp):
    return (2 * Crows_p * Kdim_p * 2         # wsub (double-buffered, bf16)
            + 2 * Kdim_p * tp * 2            # patches tile (double-buffered)
            + 2 * Crows_p * tp * 4           # output tile (pass 2)
            + 2 * Crows_p * tp * 4           # f32 intermediates / slack
            + (1 << 20))

  TP = min(2048, _round_up(Ps, 128))
  while TP > 128 and _step_bytes(TP) > usable:
    TP -= 128
  Ps_pad = _round_up(Ps, TP)
  n_pt = Ps_pad // TP
  vmem_limit = int(min(usable, max(32 * 1024 * 1024, 2 * _step_bytes(TP))))

  # channel-row split ("parallel") only when batch alone can't feed both v7x
  # TensorCores; it re-reads the patch stream, so keep it off otherwise.
  n_cr = 2 if (N % 2 == 1 and Crows_p % 32 == 0 and Crows_p >= 256) else 1
  TCR = Crows_p // n_cr

  # ---- packed sub-pixel weights: Wsub[(r*s+c)*Cout+co, (a*Dw+b)*Cin+ci] -----
  w_flip = jnp.flip(weight, axis=(2, 3)).transpose(1, 0, 2, 3)  # [Cout,Cin,K,K]
  wsub = jnp.zeros((Crows_p, Kdim_p), jnp.float32)
  for r in range(s):
    for c in range(s):
      p = r * s + c
      for (dih, kh) in row_taps[r]:
        for (djw, kw) in col_taps[c]:
          a, b = dih - di_min, djw - dj_min
          col0 = (a * Dw + b) * C_in
          wsub = wsub.at[p * C_out:(p + 1) * C_out,
                         col0:col0 + C_in].set(w_flip[:, :, kh, kw])
  wsub_bf16 = wsub.astype(jnp.bfloat16)

  # ---- transposed im2col of the UN-dilated input: [N, Kdim_p, Ps_pad] bf16 --
  pl_h = max(0, -di_min)
  ph_h = max(0, Hs - 1 + di_max - (H - 1))
  pl_w = max(0, -dj_min)
  ph_w = max(0, Ws - 1 + dj_max - (W - 1))
  xp = jnp.pad(x, ((0, 0), (0, 0), (pl_h, ph_h), (pl_w, ph_w)))
  cols = []
  for a in range(Dh):
    for b in range(Dw):
      sh = a + di_min + pl_h
      sw = b + dj_min + pl_w
      cols.append(xp[:, :, sh:sh + Hs, sw:sw + Ws].reshape(N, C_in, Ps))
  patches = jnp.concatenate(cols, axis=1)                        # [N,Kdim,Ps]
  patches = jnp.pad(patches, ((0, 0), (0, Kdim_p - Kdim), (0, Ps_pad - Ps)))
  patches = patches.astype(jnp.bfloat16)

  # ---- pass 1: stats only (no y to HBM) -------------------------------------
  stats_kernel = functools.partial(_stats_kernel, tp=TP, ps=Ps)
  mean_rows, m2_rows = pl.pallas_call(
      stats_kernel,
      out_shape=(
          jax.ShapeDtypeStruct((N, Crows_p, 1), jnp.float32),
          jax.ShapeDtypeStruct((N, Crows_p, 1), jnp.float32),
      ),
      grid_spec=pltpu.PrefetchScalarGridSpec(
          num_scalar_prefetch=0,
          grid=(N, n_cr, n_pt),
          in_specs=[
              pl.BlockSpec((TCR, Kdim_p), lambda n, r, t: (r, 0)),
              pl.BlockSpec((1, Kdim_p, TP), lambda n, r, t: (n, 0, t)),
          ],
          out_specs=[
              pl.BlockSpec((1, TCR, 1), lambda n, r, t: (n, r, 0)),
              pl.BlockSpec((1, TCR, 1), lambda n, r, t: (n, r, 0)),
          ],
      ),
      compiler_params=pltpu.CompilerParams(
          dimension_semantics=("parallel", "parallel", "arbitrary"),
          vmem_limit_bytes=vmem_limit),
  )(wsub_bf16, patches)

  # ---- tiny glue: exact equal-count combine of per-row (mean, M2) into
  #      per-group mean / inv-std, then per-row scale/shift -------------------
  mean_r = mean_rows[:, :Crows, 0]                       # [N, Crows]
  m2_r = m2_rows[:, :Crows, 0]
  cnt_row = float(Ps)
  mean_g4 = mean_r.reshape(N, s * s, G, GC)
  m2_g4 = m2_r.reshape(N, s * s, G, GC)
  g_mean = jnp.mean(mean_g4, axis=(1, 3))                # [N, G]
  dev = mean_g4 - g_mean[:, None, :, None]
  g_m2 = jnp.sum(m2_g4, axis=(1, 3)) + cnt_row * jnp.sum(dev * dev, axis=(1, 3))
  var = g_m2 / (float(s * s * GC) * cnt_row)
  inv = lax.rsqrt(var + EPS)                             # [N, G]
  inv_ch = jnp.repeat(inv, GC, axis=1)                   # [N, Cout]
  mean_ch = jnp.repeat(g_mean, GC, axis=1)
  scale_ch = inv_ch * gamma.reshape(1, C_out).astype(jnp.float32)
  shift_ch = beta.reshape(1, C_out).astype(jnp.float32) - mean_ch * scale_ch
  pad_r = Crows_p - Crows
  scale_rows = jnp.pad(jnp.tile(scale_ch, (1, s * s)),
                       ((0, 0), (0, pad_r))).reshape(N, Crows_p, 1)
  shift_rows = jnp.pad(jnp.tile(shift_ch, (1, s * s)),
                       ((0, 0), (0, pad_r))).reshape(N, Crows_p, 1)

  # ---- pass 2: recompute conv + normalize + affine + ReLU (fused) -----------
  y2 = pl.pallas_call(
      _conv_norm_relu_kernel,
      out_shape=jax.ShapeDtypeStruct((N, Crows_p, Ps_pad), out_dtype),
      grid_spec=pltpu.PrefetchScalarGridSpec(
          num_scalar_prefetch=0,
          grid=(N, n_cr, n_pt),
          in_specs=[
              pl.BlockSpec((TCR, Kdim_p), lambda n, r, t: (r, 0)),
              pl.BlockSpec((1, Kdim_p, TP), lambda n, r, t: (n, 0, t)),
              pl.BlockSpec((1, TCR, 1), lambda n, r, t: (n, r, 0)),
              pl.BlockSpec((1, TCR, 1), lambda n, r, t: (n, r, 0)),
          ],
          out_specs=pl.BlockSpec((1, TCR, TP), lambda n, r, t: (n, r, t)),
      ),
      compiler_params=pltpu.CompilerParams(
          dimension_semantics=("parallel", "parallel", "parallel"),
          vmem_limit_bytes=vmem_limit),
  )(wsub_bf16, patches, scale_rows, shift_rows)

  # ---- depth-to-space (parity interleave) back to NCHW ----------------------
  # TODO(synk): still one XLA transpose over the output; see header note.
  y2 = y2[:, :Crows, :Ps]
  out = y2.reshape(N, s, s, C_out, Hs, Ws)
  out = out.transpose(0, 3, 4, 1, 5, 2).reshape(N, C_out, H_out, W_out)
  return out


# ---------------------------------------------------------------------------
# Pure-JAX reference (PyTorch semantics).  Conv inputs are bf16-rounded to
# mirror the kernel's intentional bf16 MXU feed; GroupNorm / affine in f32.
# ---------------------------------------------------------------------------
def _reference(x, weight, gamma, beta, *, stride=2, padding=1,
               output_padding=1, group_channel=8):
  C_in, C_out, K, _ = weight.shape
  G = int(max(1, C_out / group_channel))
  xq = x.astype(jnp.bfloat16).astype(jnp.float32)
  wq = weight.astype(jnp.bfloat16).astype(jnp.float32)
  w_flip = jnp.flip(wq, axis=(2, 3)).transpose(1, 0, 2, 3)
  pad_lo = K - 1 - padding
  pad_hi = K - 1 - padding + output_padding
  y = lax.conv_general_dilated(
      xq, w_flip, window_strides=(1, 1),
      padding=((pad_lo, pad_hi), (pad_lo, pad_hi)),
      lhs_dilation=(stride, stride),
      dimension_numbers=("NCHW", "OIHW", "NCHW"))
  N, C, Ho, Wo = y.shape
  yg = y.reshape(N, G, C // G, Ho, Wo)
  mean = jnp.mean(yg, axis=(2, 3, 4), keepdims=True)
  var = jnp.mean((yg - mean) ** 2, axis=(2, 3, 4), keepdims=True)
  yn = ((yg - mean) / jnp.sqrt(var + EPS)).reshape(N, C, Ho, Wo)
  yn = yn * gamma.reshape(1, C, 1, 1) + beta.reshape(1, C, 1, 1)
  return jnp.maximum(yn, 0.0)


if __name__ == "__main__":
  # Small shapes consistent with the module (k=3, stride=2, pad=1, outpad=1).
  N, C_in, H, W = 2, 4, 16, 16
  C_out, K = 16, 3
  group_channel = 8

  key = jax.random.PRNGKey(0)
  k1, k2, k3, k4 = jax.random.split(key, 4)
  x = jax.random.normal(k1, (N, C_in, H, W), jnp.float32)
  # ConvTranspose2d weight layout: [in_channels, out_channels, K, K], bias=False
  weight = jax.random.normal(k2, (C_in, C_out, K, K), jnp.float32) * 0.1
  gamma = jax.random.normal(k3, (C_out,), jnp.float32) * 0.1 + 1.0
  beta = jax.random.normal(k4, (C_out,), jnp.float32) * 0.1

  out = deconv_gn_relu(x, weight, gamma, beta, group_channel=group_channel)
  out = jax.block_until_ready(out)

  ref = _reference(x, weight, gamma, beta, group_channel=group_channel)
  assert out.shape == (N, C_out, 2 * H, 2 * W), out.shape
  max_err = float(jnp.max(jnp.abs(out - ref)))
  assert jnp.allclose(out, ref, atol=2e-3, rtol=2e-3), max_err

  print("KERNEL_OK")
</pallas_src>

<mosaic_0001>
module attributes {stable_mosaic.version = 11 : i64} {
  func.func @_stats_kernel(%arg0: i32, %arg1: i32, %arg2: i32, %arg3: memref<64x16xbf16, #tpu.memory_space<vmem>>, %arg4: memref<1x16x256xbf16, #tpu.memory_space<vmem>>, %arg5: memref<1x64x1xf32, #tpu.memory_space<vmem>>, %arg6: memref<1x64x1xf32, #tpu.memory_space<vmem>>) attributes {dimension_semantics = [#tpu.dimension_semantics<parallel>, #tpu.dimension_semantics<parallel>, #tpu.dimension_semantics<arbitrary>], iteration_bounds = array<i64: 2, 1, 1>, scalar_prefetch = 0 : i64, scratch_operands = 0 : i64, tpu.core_type = #tpu.core_type<tc>, window_params = [{transform_indices = @transform_0, window_bounds = array<i64: 64, 16>}, {transform_indices = @transform_1, window_bounds = array<i64: 1, 16, 256>}, {transform_indices = @transform_2, window_bounds = array<i64: 1, 64, 1>}, {transform_indices = @transform_3, window_bounds = array<i64: 1, 64, 1>}]} {
    %c0_i32 = arith.constant 0 : i32
    %0 = arith.cmpi eq, %arg2, %c0_i32 : i32
    %1 = arith.extui %0 : i1 to i32
    %c0_i32_0 = arith.constant 0 : i32
    %2 = arith.cmpi ne, %1, %c0_i32_0 : i32
    scf.if %2 {
      %cst_24 = arith.constant 0.000000e+00 : f32
      %52 = vector.broadcast %cst_24 : f32 to vector<1x64x1xf32>
      %c0_25 = arith.constant 0 : index
      %c0_26 = arith.constant 0 : index
      %c0_27 = arith.constant 0 : index
      %53 = vector.load %arg5[%c0_25, %c0_26, %c0_27] : memref<1x64x1xf32, #tpu.memory_space<vmem>>, vector<1x64x1xf32>
      tpu.vector_store %arg5[%c0_25, %c0_26, %c0_27], %52 {strides = array<i32>} : memref<1x64x1xf32, #tpu.memory_space<vmem>>, vector<1x64x1xf32>,
      %cst_28 = arith.constant 0.000000e+00 : f32
      %54 = vector.broadcast %cst_28 : f32 to vector<1x64x1xf32>
      %c0_29 = arith.constant 0 : index
      %c0_30 = arith.constant 0 : index
      %c0_31 = arith.constant 0 : index
      %55 = vector.load %arg6[%c0_29, %c0_30, %c0_31] : memref<1x64x1xf32, #tpu.memory_space<vmem>>, vector<1x64x1xf32>
      tpu.vector_store %arg6[%c0_29, %c0_30, %c0_31], %54 {strides = array<i32>} : memref<1x64x1xf32, #tpu.memory_space<vmem>>, vector<1x64x1xf32>,
    } else {
    }
    %c0 = arith.constant 0 : index
    %c0_1 = arith.constant 0 : index
    %3 = vector.load %arg3[%c0, %c0_1] : memref<64x16xbf16, #tpu.memory_space<vmem>>, vector<64x16xbf16>
    %c0_2 = arith.constant 0 : index
    %c0_3 = arith.constant 0 : index
    %c0_4 = arith.constant 0 : index
    %4 = vector.load %arg4[%c0_2, %c0_3, %c0_4] : memref<1x16x256xbf16, #tpu.memory_space<vmem>>, vector<1x16x256xbf16>
    %5 = vector.shape_cast %4 : vector<1x16x256xbf16> to vector<16x256xbf16>
    %cst = arith.constant dense<0.000000e+00> : vector<64x256xf32>
    %6 = tpu.matmul %3, %5, %cst {dimension_numbers = #tpu.dot_dimension_numbers<[1], [0], [0], [1], [0, 0, 1, 1], [], []>} : vector<64x16xbf16>, vector<16x256xbf16>, vector<64x256xf32> -> vector<64x256xf32>
    %c256_i32 = arith.constant 256 : i32
    %7 = arith.muli %arg2, %c256_i32 : i32
    %c256_i32_5 = arith.constant 256 : i32
    %8 = arith.subi %c256_i32_5, %7 : i32
    %c256_i32_6 = arith.constant 256 : i32
    %9 = arith.minsi %c256_i32_6, %8 : i32
    %10 = tpu.iota {dimensions = array<i32: 1>} : vector<64x256xi32>
    %11 = vector.broadcast %9 : i32 to vector<64x256xi32>
    %12 = arith.cmpi slt, %10, %11 : vector<64x256xi32>
    %13 = arith.sitofp %9 : i32 to f32
    %cst_7 = arith.constant 0.000000e+00 : f32
    %14 = vector.broadcast %cst_7 : f32 to vector<64x256xf32>
    %15 = arith.select %12, %6, %14 : vector<64x256xi1>, vector<64x256xf32>
    %cst_8 = arith.constant dense<0.000000e+00> : vector<64xf32>
    %16 = vector.multi_reduction <add>, %15, %cst_8 [1] : vector<64x256xf32> to vector<64xf32>
    %17 = vector.shape_cast %16 : vector<64xf32> to vector<64x1xf32>
    %18 = vector.broadcast %13 : f32 to vector<64x1xf32>
    %19 = arith.divf %17, %18 : vector<64x1xf32>
    %20 = vector.broadcast %19 : vector<64x1xf32> to vector<64x256xf32>
    %21 = arith.subf %6, %20 : vector<64x256xf32>
    %cst_9 = arith.constant 0.000000e+00 : f32
    %22 = vector.broadcast %cst_9 : f32 to vector<64x256xf32>
    %23 = arith.select %12, %21, %22 : vector<64x256xi1>, vector<64x256xf32>
    %24 = arith.mulf %23, %23 : vector<64x256xf32>
    %cst_10 = arith.constant dense<0.000000e+00> : vector<64xf32>
    %25 = vector.multi_reduction <add>, %24, %cst_10 [1] : vector<64x256xf32> to vector<64xf32>
    %26 = vector.shape_cast %25 : vector<64xf32> to vector<64x1xf32>
    %c256_i32_11 = arith.constant 256 : i32
    %27 = arith.muli %arg2, %c256_i32_11 : i32
    %28 = arith.sitofp %27 : i32 to f32
    %29 = arith.addf %28, %13 : f32
    %c0_12 = arith.constant 0 : index
    %c0_13 = arith.constant 0 : index
    %c0_14 = arith.constant 0 : index
    %30 = vector.load %arg5[%c0_12, %c0_13, %c0_14] : memref<1x64x1xf32, #tpu.memory_space<vmem>>, vector<1x64x1xf32>
    %31 = vector.shape_cast %30 : vector<1x64x1xf32> to vector<64x1xf32>
    %32 = arith.subf %19, %31 : vector<64x1xf32>
    %33 = arith.divf %13, %29 : f32
    %34 = vector.broadcast %33 : f32 to vector<64x1xf32>
    %35 = arith.mulf %32, %34 : vector<64x1xf32>
    %36 = arith.addf %31, %35 : vector<64x1xf32>
    %c0_15 = arith.constant 0 : index
    %c0_16 = arith.constant 0 : index
    %c0_17 = arith.constant 0 : index
    %37 = vector.load %arg5[%c0_15, %c0_16, %c0_17] : memref<1x64x1xf32, #tpu.memory_space<vmem>>, vector<1x64x1xf32>
    %38 = vector.shape_cast %37 : vector<1x64x1xf32> to vector<64x1xf32>
    %39 = vector.shape_cast %36 : vector<64x1xf32> to vector<1x64x1xf32>
    tpu.vector_store %arg5[%c0_15, %c0_16, %c0_17], %39 {strides = array<i32>} : memref<1x64x1xf32, #tpu.memory_space<vmem>>, vector<1x64x1xf32>,
    %c0_18 = arith.constant 0 : index
    %c0_19 = arith.constant 0 : index
    %c0_20 = arith.constant 0 : index
    %40 = vector.load %arg6[%c0_18, %c0_19, %c0_20] : memref<1x64x1xf32, #tpu.memory_space<vmem>>, vector<1x64x1xf32>
    %41 = vector.shape_cast %40 : vector<1x64x1xf32> to vector<64x1xf32>
    %42 = arith.addf %41, %26 : vector<64x1xf32>
    %43 = arith.mulf %32, %32 : vector<64x1xf32>
    %44 = arith.mulf %28, %13 : f32
    %45 = arith.divf %44, %29 : f32
    %46 = vector.broadcast %45 : f32 to vector<64x1xf32>
    %47 = arith.mulf %43, %46 : vector<64x1xf32>
    %48 = arith.addf %42, %47 : vector<64x1xf32>
    %c0_21 = arith.constant 0 : index
    %c0_22 = arith.constant 0 : index
    %c0_23 = arith.constant 0 : index
    %49 = vector.load %arg6[%c0_21, %c0_22, %c0_23] : memref<1x64x1xf32, #tpu.memory_space<vmem>>, vector<1x64x1xf32>
    %50 = vector.shape_cast %49 : vector<1x64x1xf32> to vector<64x1xf32>
    %51 = vector.shape_cast %48 : vector<64x1xf32> to vector<1x64x1xf32>
    tpu.vector_store %arg6[%c0_21, %c0_22, %c0_23], %51 {strides = array<i32>} : memref<1x64x1xf32, #tpu.memory_space<vmem>>, vector<1x64x1xf32>,
    return
  }
  func.func @transform_0(%arg0: i32, %arg1: i32, %arg2: i32) -> (i32, i32) {
    %c0_i32 = arith.constant 0 : i32
    %c0_i32_0 = arith.constant 0 : i32
    return %arg1, %c0_i32 : i32, i32
  }
  func.func @transform_1(%arg0: i32, %arg1: i32, %arg2: i32) -> (i32, i32, i32) {
    %c0_i32 = arith.constant 0 : i32
    %c0_i32_0 = arith.constant 0 : i32
    return %arg0, %c0_i32, %arg2 : i32, i32, i32
  }
  func.func @transform_2(%arg0: i32, %arg1: i32, %arg2: i32) -> (i32, i32, i32) {
    %c0_i32 = arith.constant 0 : i32
    %c0_i32_0 = arith.constant 0 : i32
    return %arg0, %arg1, %c0_i32 : i32, i32, i32
  }
  func.func @transform_3(%arg0: i32, %arg1: i32, %arg2: i32) -> (i32, i32, i32) {
    %c0_i32 = arith.constant 0 : i32
    %c0_i32_0 = arith.constant 0 : i32
    return %arg0, %arg1, %c0_i32 : i32, i32, i32
  }
}

</mosaic_0001>

<llo_original>
// kernel: tpu_custom_call.1
$region0: #{tpu_custom_call.1}
  #allocation0 [shape = 'u32[]', space=smem, size = 0x4, offset = 0x4, fixed_abs, tag = 'smem constant byte address 0x4 - core index']
  #allocation1 [shape = 'u32[144,128]{1,0:T(1,128)}', space=vmem, size = 0x12000, scoped, tag = 'internal scratch']
  %s0 = inlined_call_operand.vmem [shape: bf16[64,16], index: 0, kind: input, shape index: {}]
  %s1 = inlined_call_operand.vmem [shape: bf16[2,16,256], index: 1, kind: input, shape index: {}]
  %s2 = inlined_call_operand.vmem [shape: f32[2,64,1], index: 2, kind: output, shape index: {0}]
  %s3 = inlined_call_operand.vmem [shape: f32[2,64,1], index: 3, kind: output, shape index: {1}]
  %4 = xla_tuple %s2, %s3
  %s5 = sld [smem:[#allocation0]]
  $region53: #{tpu_custom_call.1} parent=0
    _
  %s7 = ssub.s32 1, %s5
  %s8 = scalar_select 0, %s7, %s5
  loop: start=0, step=1, limit=4
  $region2: #{tpu_custom_call.1} parent=0 // loop_pre_header
    _
  $region3: #{tpu_custom_call.1} parent=0 // loop_header
    %s10 = sphi 0, %s14
    %p11 = scmp.ge.s32.totalorder %s10, 4
    %s17 = sphi 0, %s36
    %s18 = sphi 0, %s32
    %s19 = sphi 0, %s28
    %s20 = sphi 0, %s17
    %s21 = sphi 0, %s18
    %s22 = sphi 0, %s19
    %s23 = sphi 0, %s20
    %s24 = sphi 0, %s21
    %s25 = sphi 0, %s22
    %s39 = sphi 0, %s41
    %s42 = sphi 0, %s39
    %s43 = sphi 0, %s42
    %s59 = sphi 0, %s43
    %s67 = sphi 0, %s69
    %s70 = sphi 0, %s67
    %s71 = sphi 0, %s70
    %s87 = sphi 0, %s71
    %s95 = sphi 0, %s97
    %s98 = sphi 0, %s95
    %s99 = sphi 0, %s98
    %s115 = sphi 0, %s99
    %s123 = sphi 0, %s125
    %s126 = sphi 0, %s123
    %s127 = sphi 0, %s126
    %s143 = sphi 0, %s127
  $region4: #{tpu_custom_call.1} parent=0 // loop_header_branch
    %13 = sbr.rel (%p11) target = $region8
  $region5: #{tpu_custom_call.1} parent=0 // loop_body
    %s15 = ssub.s32 %s10, 1
    %s16 = ssub.s32 %s10, 2
    %s26 = sadd.s32 1, %s19
    %p27 = scmp.ge.s32.totalorder %s26, 1
    %s28 = scalar_select %p27, 0, %s26
    %s29 = sadd.s32 1, %s18
    %s30 = scalar_select %p27, %s29, %s18
    %p31 = scmp.ge.s32.totalorder %s30, 1
    %s32 = scalar_select %p31, 0, %s30
    %s33 = sadd.s32 1, %s17
    %s34 = scalar_select %p31, %s33, %s17
    %p35 = scmp.ge.s32.totalorder %s34, 2
    %s36 = scalar_select %p35, 0, %s34
    %s37 = ssub.s32 %s18, %s32
    %p38 = scmp.eq.s32.totalorder %s37, 0
    %s40 = sadd.s32 %s39, 1
    %s41 = scalar_select %p38, %s39, %s40
    %p44 = pneg %p38
    %p45 = scmp.eq.s32.totalorder %s10, 1
    %p46 = por %p44, %p45
    %p47 = scmp.ne.s32.totalorder %s39, %s42
    %p48 = scmp.eq.s32.totalorder %s10, 0
    %p49 = por %p47, %p48
    %p50 = scmp.ne.s32.totalorder %s39, %s42
    %p51 = scmp.eq.s32.totalorder %s15, 1
    %p52 = por %p50, %p51
    %p53 = scmp.ne.s32.totalorder %s42, %s43
    %p54 = scmp.eq.s32.totalorder %s15, 0
    %p55 = por %p53, %p54
    %p56 = scmp.ne.s32.totalorder %s42, %s43
    %p57 = scmp.eq.s32.totalorder %s16, 1
    %p58 = por %p56, %p57
    %p60 = scmp.ne.s32.totalorder %s43, %s59
    %p61 = scmp.eq.s32.totalorder %s16, 0
    %p62 = por %p60, %p61
    %s63 = ssub.s32 %s17, %s36
    %s64 = ssub.s32 %s19, %s28
    %s65 = sor.u32 %s63, %s64
    %p66 = scmp.eq.s32.totalorder %s65, 0
    %s68 = sadd.s32 %s67, 1
    %s69 = scalar_select %p66, %s67, %s68
    %p72 = pneg %p66
    %p73 = scmp.eq.s32.totalorder %s10, 1
    %p74 = por %p72, %p73
    %p75 = scmp.ne.s32.totalorder %s67, %s70
    %p76 = scmp.eq.s32.totalorder %s10, 0
    %p77 = por %p75, %p76
    %p78 = scmp.ne.s32.totalorder %s67, %s70
    %p79 = scmp.eq.s32.totalorder %s15, 1
    %p80 = por %p78, %p79
    %p81 = scmp.ne.s32.totalorder %s70, %s71
    %p82 = scmp.eq.s32.totalorder %s15, 0
    %p83 = por %p81, %p82
    %p84 = scmp.ne.s32.totalorder %s70, %s71
    %p85 = scmp.eq.s32.totalorder %s16, 1
    %p86 = por %p84, %p85
    %p88 = scmp.ne.s32.totalorder %s71, %s87
    %p89 = scmp.eq.s32.totalorder %s16, 0
    %p90 = por %p88, %p89
    %s91 = ssub.s32 %s17, %s36
    %s92 = ssub.s32 %s18, %s32
    %s93 = sor.u32 %s91, %s92
    %p94 = scmp.eq.s32.totalorder %s93, 0
    %s96 = sadd.s32 %s95, 1
    %s97 = scalar_select %p94, %s95, %s96
    %p100 = pneg %p94
    %p101 = scmp.eq.s32.totalorder %s10, 1
    %p102 = por %p100, %p101
    %p103 = scmp.ne.s32.totalorder %s95, %s98
    %p104 = scmp.eq.s32.totalorder %s10, 0
    %p105 = por %p103, %p104
    %p106 = scmp.ne.s32.totalorder %s95, %s98
    %p107 = scmp.eq.s32.totalorder %s15, 1
    %p108 = por %p106, %p107
    %p109 = scmp.ne.s32.totalorder %s98, %s99
    %p110 = scmp.eq.s32.totalorder %s15, 0
    %p111 = por %p109, %p110
    %p112 = scmp.ne.s32.totalorder %s98, %s99
    %p113 = scmp.eq.s32.totalorder %s16, 1
    %p114 = por %p112, %p113
    %p116 = scmp.ne.s32.totalorder %s99, %s115
    %p117 = scmp.eq.s32.totalorder %s16, 0
    %p118 = por %p116, %p117
    %s119 = ssub.s32 %s17, %s36
    %s120 = ssub.s32 %s18, %s32
    %s121 = sor.u32 %s119, %s120
    %p122 = scmp.eq.s32.totalorder %s121, 0
    %s124 = sadd.s32 %s123, 1
    %s125 = scalar_select %p122, %s123, %s124
    %p128 = pneg %p122
    %p129 = scmp.eq.s32.totalorder %s10, 1
    %p130 = por %p128, %p129
    %p131 = scmp.ne.s32.totalorder %s123, %s126
    %p132 = scmp.eq.s32.totalorder %s10, 0
    %p133 = por %p131, %p132
    %p134 = scmp.ne.s32.totalorder %s123, %s126
    %p135 = scmp.eq.s32.totalorder %s15, 1
    %p136 = por %p134, %p135
    %p137 = scmp.ne.s32.totalorder %s126, %s127
    %p138 = scmp.eq.s32.totalorder %s15, 0
    %p139 = por %p137, %p138
    %p140 = scmp.ne.s32.totalorder %s126, %s127
    %p141 = scmp.eq.s32.totalorder %s16, 1
    %p142 = por %p140, %p141
    %p144 = scmp.ne.s32.totalorder %s127, %s143
    %p145 = scmp.eq.s32.totalorder %s16, 0
    %p146 = por %p144, %p145
    %p147 = scmp.le.s32.totalorder 1, %s10
    %p148 = scmp.lt.s32.totalorder %s10, 3
    %p149 = pnand %p147, %p148
    %p150 = pneg %p149
    // Predicated region
    $region9: #{tpu_custom_call.1} parent=5 // pred_check
      _
    $region10: #{tpu_custom_call.1} parent=5 // pred_check_branch
      %152 = sbr.rel (%p149) target = $region12
    $region11: #{tpu_custom_call.1} parent=5 // pred_region
      %s153 = ssub.s32 %s10, 1
      // Predicated region
      $region13: #{tpu_custom_call.1} parent=11 // pred_check
        %p154 = pneg %p55
      $region14: #{tpu_custom_call.1} parent=11 // pred_check_branch
        %156 = sbr.rel (%p154) target = $region16
      $region15: #{tpu_custom_call.1} parent=11 // pred_region
        %s157 = smul.u32 8, %s21
        %p158 = scmp.lt.s32.totalorder %s157, 7
        %s159 = scalar_select %p158, %s157, 7
        %s160 = smul.addr %s159, 4
        %s161 = scalar_lea.vmem %s0, %s160
        %s162 = smul.u32 8, %s21
      $region16: #{tpu_custom_call.1} parent=11 // pred_fallthru
        _
    $region12: #{tpu_custom_call.1} parent=5 // pred_fallthru
      _
    %p163 = scmp.lt.s32.totalorder %s10, 2
    // Predicated region
    $region17: #{tpu_custom_call.1} parent=5 // pred_check
      %p164 = pneg %p163
    $region18: #{tpu_custom_call.1} parent=5 // pred_check_branch
      %166 = sbr.rel (%p164) target = $region20
    $region19: #{tpu_custom_call.1} parent=5 // pred_region
      // Predicated region
      $region21: #{tpu_custom_call.1} parent=19 // pred_check
        %p167 = pneg %p77
      $region22: #{tpu_custom_call.1} parent=19 // pred_check_branch
        %169 = sbr.rel (%p167) target = $region24
      $region23: #{tpu_custom_call.1} parent=19 // pred_region
        %s170 = smul.u32 2, %s19
        %p171 = scmp.lt.s32.totalorder %s17, 1
        %s172 = scalar_select %p171, %s17, 1
        %p173 = scmp.lt.s32.totalorder %s170, 1
        %s174 = scalar_select %p173, %s170, 1
        %s175 = smul.addr %s172, 4
        %s176 = sadd.s32 %s174, %s175
        %s177 = smul.addr %s176, 4
        %s178 = scalar_lea.vmem %s1, %s177
        %s179 = smul.u32 2, %s19
      $region24: #{tpu_custom_call.1} parent=19 // pred_fallthru
        _
    $region20: #{tpu_custom_call.1} parent=5 // pred_fallthru
      _
    %p180 = scmp.le.s32.totalorder 1, %s10
    %p181 = scmp.lt.s32.totalorder %s10, 3
    %p182 = pnand %p180, %p181
    %p183 = pneg %p182
    // Predicated region
    $region25: #{tpu_custom_call.1} parent=5 // pred_check
      _
    $region26: #{tpu_custom_call.1} parent=5 // pred_check_branch
      %185 = sbr.rel (%p182) target = $region28
    $region27: #{tpu_custom_call.1} parent=5 // pred_region
      %s186 = ssub.s32 %s10, 1
      %s187 = smul.u32 8, %s21
      %p188 = scmp.lt.s32.totalorder %s187, 7
      %s189 = scalar_select %p188, %s187, 7
      %s190 = smul.addr %s189, 4
      %s191 = scalar_lea.vmem %s0, %s190
      %p192 = pneg %p55
      %p193 = pneg %p52
      %s194 = smul.u32 2, %s22
      %p195 = scmp.lt.s32.totalorder %s20, 1
      %s196 = scalar_select %p195, %s20, 1
      %p197 = scmp.lt.s32.totalorder %s194, 1
      %s198 = scalar_select %p197, %s194, 1
      %s199 = smul.addr %s196, 4
      %s200 = sadd.s32 %s198, %s199
      %s201 = smul.addr %s200, 4
      %s202 = scalar_lea.vmem %s1, %s201
      %p203 = pneg %p83
      %p204 = pneg %p80
      %p205 = pneg %p111
      %p206 = pneg %p108
      %s207 = smul.u32 8, %s21
      %p208 = scmp.lt.s32.totalorder %s20, 1
      %s209 = scalar_select %p208, %s20, 1
      %p210 = scmp.lt.s32.totalorder %s207, 7
      %s211 = scalar_select %p210, %s207, 7
      %s212 = smul.addr %s209, 8
      %s213 = sadd.s32 %s211, %s212
      %s214 = smul.addr %s213, 8
      %s215 = scalar_lea.vmem %s2, %s214
      %p216 = pneg %p139
      %p217 = pneg %p136
      %s218 = smul.u32 8, %s21
      %p219 = scmp.lt.s32.totalorder %s20, 1
      %s220 = scalar_select %p219, %s20, 1
      %p221 = scmp.lt.s32.totalorder %s218, 7
      %s222 = scalar_select %p221, %s218, 7
      %s223 = smul.addr %s220, 8
      %s224 = sadd.s32 %s222, %s223
      %s225 = smul.addr %s224, 8
      %s226 = scalar_lea.vmem %s3, %s225
      %s227 = smul.u32 8, %s21
      %p228 = scmp.lt.s32.totalorder %s227, 7
      %s229 = scalar_select %p228, %s227, 7
      %s230 = smul.addr %s229, 4
      %s231 = scalar_lea.vmem %s0, %s230
      %s232 = smul.u32 8, %s21
      %s233 = smul.u32 2, %s22
      %p234 = scmp.lt.s32.totalorder %s20, 1
      %s235 = scalar_select %p234, %s20, 1
      %p236 = scmp.lt.s32.totalorder %s233, 1
      %s237 = scalar_select %p236, %s233, 1
      %s238 = smul.addr %s235, 4
      %s239 = sadd.s32 %s237, %s238
      %s240 = smul.addr %s239, 4
      %s241 = scalar_lea.vmem %s1, %s240
      %s242 = smul.u32 2, %s22
      %s243 = smul.u32 8, %s21
      %p244 = scmp.lt.s32.totalorder %s20, 1
      %s245 = scalar_select %p244, %s20, 1
      %p246 = scmp.lt.s32.totalorder %s243, 7
      %s247 = scalar_select %p246, %s243, 7
      %s248 = smul.addr %s245, 8
      %s249 = sadd.s32 %s247, %s248
      %s250 = smul.addr %s249, 8
      %s251 = scalar_lea.vmem %s2, %s250
      %s252 = smul.u32 8, %s21
      %s253 = smul.u32 8, %s21
      %p254 = scmp.lt.s32.totalorder %s20, 1
      %s255 = scalar_select %p254, %s20, 1
      %p256 = scmp.lt.s32.totalorder %s253, 7
      %s257 = scalar_select %p256, %s253, 7
      %s258 = smul.addr %s255, 8
      %s259 = sadd.s32 %s257, %s258
      %s260 = smul.addr %s259, 8
      %s261 = scalar_lea.vmem %s3, %s260
      %s262 = smul.u32 8, %s21
      %p264 = scmp.eq.s32.totalorder %s22, 0
      // Predicated region
      $region29: #{tpu_custom_call.1} parent=27 // pred_check
        %p265 = pneg %p264
      $region30: #{tpu_custom_call.1} parent=27 // pred_check_branch
        %267 = sbr.rel (%p265) target = $region32
      $region31: #{tpu_custom_call.1} parent=27 // pred_region
        %vm268 = vcmask 7168
        %269 = vst.msk [vmem:[%s251] sm:$0xff] %vm268, 0.0
        %270 = vst.msk [vmem:[%s251 + $0x8] sm:$0xff] %vm268, 0.0
        %271 = vst.msk [vmem:[%s251 + $0x10] sm:$0xff] %vm268, 0.0
        %272 = vst.msk [vmem:[%s251 + $0x18] sm:$0xff] %vm268, 0.0
        %273 = vst.msk [vmem:[%s251 + $0x20] sm:$0xff] %vm268, 0.0
        %274 = vst.msk [vmem:[%s251 + $0x28] sm:$0xff] %vm268, 0.0
        %275 = vst.msk [vmem:[%s251 + $0x30] sm:$0xff] %vm268, 0.0
        %276 = vst.msk [vmem:[%s251 + $0x38] sm:$0xff] %vm268, 0.0
        %277 = vst.msk [vmem:[%s261] sm:$0xff] %vm268, 0.0
        %278 = vst.msk [vmem:[%s261 + $0x8] sm:$0xff] %vm268, 0.0
        %279 = vst.msk [vmem:[%s261 + $0x10] sm:$0xff] %vm268, 0.0
        %280 = vst.msk [vmem:[%s261 + $0x18] sm:$0xff] %vm268, 0.0
        %281 = vst.msk [vmem:[%s261 + $0x20] sm:$0xff] %vm268, 0.0
        %282 = vst.msk [vmem:[%s261 + $0x28] sm:$0xff] %vm268, 0.0
        %283 = vst.msk [vmem:[%s261 + $0x30] sm:$0xff] %vm268, 0.0
        %284 = vst.msk [vmem:[%s261 + $0x38] sm:$0xff] %vm268, 0.0
      $region32: #{tpu_custom_call.1} parent=27 // pred_fallthru
        _
      %v285 = vld [vmem:[%s231] sm:$0xf]
      %v286 = vld [vmem:[%s231 + $0x4] sm:$0xf]
      %v287 = vld [vmem:[%s231 + $0x8] sm:$0xf]
      %v288 = vld [vmem:[%s231 + $0xc] sm:$0xf]
      %v289 = vld [vmem:[%s231 + $0x10] sm:$0xf]
      %v290 = vld [vmem:[%s231 + $0x14] sm:$0xf]
      %v291 = vld [vmem:[%s231 + $0x18] sm:$0xf]
      %v292 = vld [vmem:[%s231 + $0x1c] sm:$0xf]
      %v293 = vld [vmem:[%s241] sm:$0xff]
      %v294 = vld [vmem:[%s241 + $0x8] sm:$0xff]
      %v303 = vunpack.c.l.b16 %v285
      %v304 = vunpack.c.l.b16 %v286
      %v305 = vunpack.c.l.b16 %v287
      %v306 = vunpack.c.l.b16 %v288
      %v307 = vunpack.c.l.b16 %v289
      %v308 = vunpack.c.l.b16 %v290
      %v309 = vunpack.c.l.b16 %v291
      %v310 = vunpack.c.l.b16 %v292
      %v311 = vpack.c.b16 %v304, %v303
      %v312 = vpack.c.b16 %v306, %v305
      %v313 = vpack.c.b16 %v308, %v307
      %v314 = vpack.c.b16 %v310, %v309
      %v317 = vunpack.c.l.b16 %v293
      %v318 = vunpack.c.h.b16 %v293
      %v319 = vunpack.c.l.b16 %v294
      %v320 = vunpack.c.h.b16 %v294
      %v321 = vpack.c.b16 %v319, %v317
      %v322 = vpack.c.b16 %v320, %v318
      %vm325 = vcmask 130048
      %v327 = vsel %vm325, %v311, 0
      %v330 = vsel %vm325, %v312, 0
      %v333 = vsel %vm325, %v313, 0
      %v336 = vsel %vm325, %v314, 0
      %338 = vmatprep.subr.bf16.mxu0 %v322
      %339 = vmatpush1.bf16.msra.mxu0 %v321
      %340 = vmatprep.subr.bf16.mxu0 0
      %341 = vmatpush1.bf16.msra.mxu0 0
      %342 = vmatprep.subr.bf16.mxu0 0
      %343 = vmatpush1.bf16.msra.mxu0 0
      %344 = vmatprep.subr.bf16.mxu0 0
      %345 = vmatpush1.bf16.msra.mxu0 0
      %346 = vmatprep.subr.bf16.mxu0 0
      %347 = vmatpush1.bf16.msra.mxu0 0
      %348 = vmatprep.subr.bf16.mxu0 0
      %349 = vmatpush1.bf16.msra.mxu0 0
      %350 = vmatprep.subr.bf16.mxu0 0
      %351 = vmatpush1.bf16.msra.mxu0 0
      %352 = vmatprep.subr.bf16.mxu0 0
      %353 = vmatpush1.bf16.msra.mxu0 0
      %354 = vmatprep.subr.bf16.mxu0 0
      %355 = vmatpush1.bf16.msra.mxu0 0
      %356 = vmatprep.subr.bf16.mxu0 0
      %357 = vmatpush1.bf16.msra.mxu0 0
      %358 = vmatprep.subr.bf16.mxu0 0
      %359 = vmatpush1.bf16.msra.mxu0 0
      %360 = vmatprep.subr.bf16.mxu0 0
      %361 = vmatpush1.bf16.msra.mxu0 0
      %362 = vmatprep.subr.bf16.mxu0 0
      %363 = vmatpush1.bf16.msra.mxu0 0
      %364 = vmatprep.subr.bf16.mxu0 0
      %365 = vmatpush1.bf16.msra.mxu0 0
      %366 = vmatprep.subr.bf16.mxu0 0
      %367 = vmatpush1.bf16.msra.mxu0 0
      %368 = vmatprep.subr.bf16.mxu0 0
      %369 = vmatpush1.bf16.msra.mxu0 0
      %370 = vmatprep.mubr.bf16.mxu0 0
      %371 = vmatmul.mubr.bf16.gmra.mrb[0].mxu0 %v327
      %v372 = vpop.f32.mrb[0].mxu0
      %v373 = vadd.f32 0.0, %v372
      %v374 = vpop.f32.mrb[0].mxu0
      %v375 = vadd.f32 0.0, %v374
      %v376 = vpop.f32.mrb[0].mxu0
      %v377 = vadd.f32 0.0, %v376
      %v378 = vpop.f32.mrb[0].mxu0
      %v379 = vadd.f32 0.0, %v378
      %380 = vmatprep.mubr.bf16.mxu0 0
      %381 = vmatmul.mubr.bf16.gmra.mrb[0].mxu0 %v330
      %v382 = vpop.f32.mrb[0].mxu0
      %v383 = vadd.f32 0.0, %v382
      %v384 = vpop.f32.mrb[0].mxu0
      %v385 = vadd.f32 0.0, %v384
      %v386 = vpop.f32.mrb[0].mxu0
      %v387 = vadd.f32 0.0, %v386
      %v388 = vpop.f32.mrb[0].mxu0
      %v389 = vadd.f32 0.0, %v388
      %390 = vmatprep.mubr.bf16.mxu0 0
      %391 = vmatmul.mubr.bf16.gmra.mrb[0].mxu0 %v333
      %v392 = vpop.f32.mrb[0].mxu0
      %v393 = vadd.f32 0.0, %v392
      %v394 = vpop.f32.mrb[0].mxu0
      %v395 = vadd.f32 0.0, %v394
      %v396 = vpop.f32.mrb[0].mxu0
      %v397 = vadd.f32 0.0, %v396
      %v398 = vpop.f32.mrb[0].mxu0
      %v399 = vadd.f32 0.0, %v398
      %400 = vmatprep.mubr.bf16.mxu0 0
      %401 = vmatmul.mubr.bf16.gmra.mrb[0].mxu0 %v336
      %v402 = vpop.f32.mrb[0].mxu0
      %v403 = vadd.f32 0.0, %v402
      %v404 = vpop.f32.mrb[0].mxu0
      %v405 = vadd.f32 0.0, %v404
      %v406 = vpop.f32.mrb[0].mxu0
      %v407 = vadd.f32 0.0, %v406
      %v408 = vpop.f32.mrb[0].mxu0
      %v409 = vadd.f32 0.0, %v408
      %410 = vdwg.mxu0
      %s411 = smul.u32 %s22, 256
      %s412 = ssub.s32 256, %s411
      %p413 = scmp.lt.s32.totalorder %s412, 256
      %s414 = scalar_select %p413, %s412, 256
      %v415 = vlaneseq
      %v416 = vand.u32 %v415, 127
      %v417 = vadd.s32 %v416, 128
      %v418 = vstv %s414
      %vm419 = vcmp.lt.s32.totalorder %v416, %v418
      %vm420 = vcmp.lt.s32.totalorder %v417, %v418
      %s421 = scvt.s32.f32 %s414
      %v422 = vsel %vm419, %v373, 0.0
      %v423 = vsel %vm420, %v375, 0.0
      %v424 = vsel %vm419, %v377, 0.0
      %v425 = vsel %vm420, %v379, 0.0
      %v426 = vsel %vm419, %v383, 0.0
      %v427 = vsel %vm420, %v385, 0.0
      %v428 = vsel %vm419, %v387, 0.0
      %v429 = vsel %vm420, %v389, 0.0
      %v430 = vsel %vm419, %v393, 0.0
      %v431 = vsel %vm420, %v395, 0.0
      %v432 = vsel %vm419, %v397, 0.0
      %v433 = vsel %vm420, %v399, 0.0
      %v434 = vsel %vm419, %v403, 0.0
      %v435 = vsel %vm420, %v405, 0.0
      %v436 = vsel %vm419, %v407, 0.0
      %v437 = vsel %vm420, %v409, 0.0
      %v438 = vadd.f32 %v422, %v423
      %439 = vadd.xlane.f32.xlu0 %v438
      %v440 = vpop.xlane.xlu0 %439
      %v441 = vadd.f32 %v424, %v425
      %442 = vadd.xlane.f32.xlu0 %v441
      %v443 = vpop.xlane.xlu0 %442
      %v444 = vadd.f32 %v426, %v427
      %445 = vadd.xlane.f32.xlu0 %v444
      %v446 = vpop.xlane.xlu0 %445
      %v447 = vadd.f32 %v428, %v429
      %448 = vadd.xlane.f32.xlu0 %v447
      %v449 = vpop.xlane.xlu0 %448
      %v450 = vadd.f32 %v430, %v431
      %451 = vadd.xlane.f32.xlu0 %v450
      %v452 = vpop.xlane.xlu0 %451
      %v453 = vadd.f32 %v432, %v433
      %454 = vadd.xlane.f32.xlu0 %v453
      %v455 = vpop.xlane.xlu0 %454
      %v456 = vadd.f32 %v434, %v435
      %457 = vadd.xlane.f32.xlu0 %v456
      %v458 = vpop.xlane.xlu0 %457
      %v459 = vadd.f32 %v436, %v437
      %460 = vadd.xlane.f32.xlu0 %v459
      %v461 = vpop.xlane.xlu0 %460
      %v462 = vstv %s421
      %v463 = vrcp.pop %v462
      %v464 = vmul.f32 %v440, %v463
      %v465 = vmul.f32 %v443, %v463
      %v466 = vmul.f32 %v446, %v463
      %v467 = vmul.f32 %v449, %v463
      %v468 = vmul.f32 %v452, %v463
      %v469 = vmul.f32 %v455, %v463
      %v470 = vmul.f32 %v458, %v463
      %v471 = vmul.f32 %v461, %v463
      %v472 = vsub.f32 %v373, %v464
      %v473 = vsub.f32 %v375, %v464
      %v474 = vsub.f32 %v377, %v465
      %v475 = vsub.f32 %v379, %v465
      %v476 = vsub.f32 %v383, %v466
      %v477 = vsub.f32 %v385, %v466
      %v478 = vsub.f32 %v387, %v467
      %v479 = vsub.f32 %v389, %v467
      %v480 = vsub.f32 %v393, %v468
      %v481 = vsub.f32 %v395, %v468
      %v482 = vsub.f32 %v397, %v469
      %v483 = vsub.f32 %v399, %v469
      %v484 = vsub.f32 %v403, %v470
      %v485 = vsub.f32 %v405, %v470
      %v486 = vsub.f32 %v407, %v471
      %v487 = vsub.f32 %v409, %v471
      %v488 = vsel %vm419, %v472, 0.0
      %v489 = vsel %vm420, %v473, 0.0
      %v490 = vsel %vm419, %v474, 0.0
      %v491 = vsel %vm420, %v475, 0.0
      %v492 = vsel %vm419, %v476, 0.0
      %v493 = vsel %vm420, %v477, 0.0
      %v494 = vsel %vm419, %v478, 0.0
      %v495 = vsel %vm420, %v479, 0.0
      %v496 = vsel %vm419, %v480, 0.0
      %v497 = vsel %vm420, %v481, 0.0
      %v498 = vsel %vm419, %v482, 0.0
      %v499 = vsel %vm420, %v483, 0.0
      %v500 = vsel %vm419, %v484, 0.0
      %v501 = vsel %vm420, %v485, 0.0
      %v502 = vsel %vm419, %v486, 0.0
      %v503 = vsel %vm420, %v487, 0.0
      %v504 = vmul.f32 %v488, %v488
      %v505 = vmul.f32 %v489, %v489
      %v506 = vmul.f32 %v490, %v490
      %v507 = vmul.f32 %v491, %v491
      %v508 = vmul.f32 %v492, %v492
      %v509 = vmul.f32 %v493, %v493
      %v510 = vmul.f32 %v494, %v494
      %v511 = vmul.f32 %v495, %v495
      %v512 = vmul.f32 %v496, %v496
      %v513 = vmul.f32 %v497, %v497
      %v514 = vmul.f32 %v498, %v498
      %v515 = vmul.f32 %v499, %v499
      %v516 = vmul.f32 %v500, %v500
      %v517 = vmul.f32 %v501, %v501
      %v518 = vmul.f32 %v502, %v502
      %v519 = vmul.f32 %v503, %v503
      %v520 = vadd.f32 %v504, %v505
      %521 = vadd.xlane.f32.xlu0 %v520
      %v522 = vpop.xlane.xlu0 %521
      %v523 = vadd.f32 %v506, %v507
      %524 = vadd.xlane.f32.xlu0 %v523
      %v525 = vpop.xlane.xlu0 %524
      %v526 = vadd.f32 %v508, %v509
      %527 = vadd.xlane.f32.xlu0 %v526
      %v528 = vpop.xlane.xlu0 %527
      %v529 = vadd.f32 %v510, %v511
      %530 = vadd.xlane.f32.xlu0 %v529
      %v531 = vpop.xlane.xlu0 %530
      %v532 = vadd.f32 %v512, %v513
      %533 = vadd.xlane.f32.xlu0 %v532
      %v534 = vpop.xlane.xlu0 %533
      %v535 = vadd.f32 %v514, %v515
      %536 = vadd.xlane.f32.xlu0 %v535
      %v537 = vpop.xlane.xlu0 %536
      %v538 = vadd.f32 %v516, %v517
      %539 = vadd.xlane.f32.xlu0 %v538
      %v540 = vpop.xlane.xlu0 %539
      %v541 = vadd.f32 %v518, %v519
      %542 = vadd.xlane.f32.xlu0 %v541
      %v543 = vpop.xlane.xlu0 %542
      %s544 = scvt.s32.f32 %s411
      %s545 = sadd.f32 %s544, %s421
      %v546 = vld [vmem:[%s251] sm:$0xff]
      %v547 = vld [vmem:[%s251 + $0x8] sm:$0xff]
      %v548 = vld [vmem:[%s251 + $0x10] sm:$0xff]
      %v549 = vld [vmem:[%s251 + $0x18] sm:$0xff]
      %v550 = vld [vmem:[%s251 + $0x20] sm:$0xff]
      %v551 = vld [vmem:[%s251 + $0x28] sm:$0xff]
      %v552 = vld [vmem:[%s251 + $0x30] sm:$0xff]
      %v553 = vld [vmem:[%s251 + $0x38] sm:$0xff]
      %v554 = vsub.f32 %v464, %v546
      %v555 = vsub.f32 %v465, %v547
      %v556 = vsub.f32 %v466, %v548
      %v557 = vsub.f32 %v467, %v549
      %v558 = vsub.f32 %v468, %v550
      %v559 = vsub.f32 %v469, %v551
      %v560 = vsub.f32 %v470, %v552
      %v561 = vsub.f32 %v471, %v553
      %v562 = vstv %s545
      %v563 = vrcp.pop %v562
      %s564 = vtos %v563
      %s565 = smul.f32 %s421, %s564
      %v566 = vstv %s565
      %v567 = vmul.f32 %v554, %v566
      %v568 = vmul.f32 %v555, %v566
      %v569 = vmul.f32 %v556, %v566
      %v570 = vmul.f32 %v557, %v566
      %v571 = vmul.f32 %v558, %v566
      %v572 = vmul.f32 %v559, %v566
      %v573 = vmul.f32 %v560, %v566
      %v574 = vmul.f32 %v561, %v566
      %v575 = vadd.f32 %v546, %v567
      %v576 = vadd.f32 %v547, %v568
      %v577 = vadd.f32 %v548, %v569
      %v578 = vadd.f32 %v549, %v570
      %v579 = vadd.f32 %v550, %v571
      %v580 = vadd.f32 %v551, %v572
      %v581 = vadd.f32 %v552, %v573
      %v582 = vadd.f32 %v553, %v574
      %vm583 = vcmask 7168
      %584 = vst.msk [vmem:[%s251] sm:$0xff] %vm583, %v575
      %585 = vst.msk [vmem:[%s251 + $0x8] sm:$0xff] %vm583, %v576
      %586 = vst.msk [vmem:[%s251 + $0x10] sm:$0xff] %vm583, %v577
      %587 = vst.msk [vmem:[%s251 + $0x18] sm:$0xff] %vm583, %v578
      %588 = vst.msk [vmem:[%s251 + $0x20] sm:$0xff] %vm583, %v579
      %589 = vst.msk [vmem:[%s251 + $0x28] sm:$0xff] %vm583, %v580
      %590 = vst.msk [vmem:[%s251 + $0x30] sm:$0xff] %vm583, %v581
      %591 = vst.msk [vmem:[%s251 + $0x38] sm:$0xff] %vm583, %v582
      %v592 = vld [vmem:[%s261] sm:$0xff]
      %v593 = vld [vmem:[%s261 + $0x8] sm:$0xff]
      %v594 = vld [vmem:[%s261 + $0x10] sm:$0xff]
      %v595 = vld [vmem:[%s261 + $0x18] sm:$0xff]
      %v596 = vld [vmem:[%s261 + $0x20] sm:$0xff]
      %v597 = vld [vmem:[%s261 + $0x28] sm:$0xff]
      %v598 = vld [vmem:[%s261 + $0x30] sm:$0xff]
      %v599 = vld [vmem:[%s261 + $0x38] sm:$0xff]
      %v600 = vadd.f32 %v592, %v522
      %v601 = vadd.f32 %v593, %v525
      %v602 = vadd.f32 %v594, %v528
      %v603 = vadd.f32 %v595, %v531
      %v604 = vadd.f32 %v596, %v534
      %v605 = vadd.f32 %v597, %v537
      %v606 = vadd.f32 %v598, %v540
      %v607 = vadd.f32 %v599, %v543
      %v608 = vmul.f32 %v554, %v554
      %v609 = vmul.f32 %v555, %v555
      %v610 = vmul.f32 %v556, %v556
      %v611 = vmul.f32 %v557, %v557
      %v612 = vmul.f32 %v558, %v558
      %v613 = vmul.f32 %v559, %v559
      %v614 = vmul.f32 %v560, %v560
      %v615 = vmul.f32 %v561, %v561
      %s616 = smul.f32 %s544, %s421
      %v617 = vstv %s545
      %v618 = vrcp.pop %v617
      %s619 = vtos %v618
      %s620 = smul.f32 %s616, %s619
      %v621 = vstv %s620
      %v622 = vmul.f32 %v608, %v621
      %v623 = vmul.f32 %v609, %v621
      %v624 = vmul.f32 %v610, %v621
      %v625 = vmul.f32 %v611, %v621
      %v626 = vmul.f32 %v612, %v621
      %v627 = vmul.f32 %v613, %v621
      %v628 = vmul.f32 %v614, %v621
      %v629 = vmul.f32 %v615, %v621
      %v630 = vadd.f32 %v600, %v622
      %v631 = vadd.f32 %v601, %v623
      %v632 = vadd.f32 %v602, %v624
      %v633 = vadd.f32 %v603, %v625
      %v634 = vadd.f32 %v604, %v626
      %v635 = vadd.f32 %v605, %v627
      %v636 = vadd.f32 %v606, %v628
      %v637 = vadd.f32 %v607, %v629
      %638 = vst.msk [vmem:[%s261] sm:$0xff] %vm583, %v630
      %639 = vst.msk [vmem:[%s261 + $0x8] sm:$0xff] %vm583, %v631
      %640 = vst.msk [vmem:[%s261 + $0x10] sm:$0xff] %vm583, %v632
      %641 = vst.msk [vmem:[%s261 + $0x18] sm:$0xff] %vm583, %v633
      %642 = vst.msk [vmem:[%s261 + $0x20] sm:$0xff] %vm583, %v634
      %643 = vst.msk [vmem:[%s261 + $0x28] sm:$0xff] %vm583, %v635
      %644 = vst.msk [vmem:[%s261 + $0x30] sm:$0xff] %vm583, %v636
      %645 = vst.msk [vmem:[%s261 + $0x38] sm:$0xff] %vm583, %v637
      %s646 = smul.u32 8, %s21
      %p647 = scmp.lt.s32.totalorder %s20, 1
      %s648 = scalar_select %p647, %s20, 1
      %p649 = scmp.lt.s32.totalorder %s646, 7
      %s650 = scalar_select %p649, %s646, 7
      %s651 = smul.addr %s648, 8
      %s652 = sadd.s32 %s650, %s651
      %s653 = smul.addr %s652, 8
      %s654 = scalar_lea.vmem %s2, %s653
      %s655 = smul.u32 8, %s21
      %p656 = scmp.lt.s32.totalorder %s20, 1
      %s657 = scalar_select %p656, %s20, 1
      %p658 = scmp.lt.s32.totalorder %s655, 7
      %s659 = scalar_select %p658, %s655, 7
      %s660 = smul.addr %s657, 8
      %s661 = sadd.s32 %s659, %s660
      %s662 = smul.addr %s661, 8
      %s663 = scalar_lea.vmem %s3, %s662
      // Predicated region
      $region33: #{tpu_custom_call.1} parent=27 // pred_check
        %p664 = pneg %p108
      $region34: #{tpu_custom_call.1} parent=27 // pred_check_branch
        %666 = sbr.rel (%p664) target = $region36
      $region35: #{tpu_custom_call.1} parent=27 // pred_region
        %s667 = smul.u32 8, %s21
      $region36: #{tpu_custom_call.1} parent=27 // pred_fallthru
        _
      // Predicated region
      $region37: #{tpu_custom_call.1} parent=27 // pred_check
        %p668 = pneg %p136
      $region38: #{tpu_custom_call.1} parent=27 // pred_check_branch
        %670 = sbr.rel (%p668) target = $region40
      $region39: #{tpu_custom_call.1} parent=27 // pred_region
        %s671 = smul.u32 8, %s21
      $region40: #{tpu_custom_call.1} parent=27 // pred_fallthru
        _
    $region28: #{tpu_custom_call.1} parent=5 // pred_fallthru
      _
    %p672 = scmp.le.s32.totalorder 2, %s10
    // Predicated region
    $region41: #{tpu_custom_call.1} parent=5 // pred_check
      %p673 = pneg %p672
    $region42: #{tpu_custom_call.1} parent=5 // pred_check_branch
      %675 = sbr.rel (%p673) target = $region44
    $region43: #{tpu_custom_call.1} parent=5 // pred_region
      %s676 = ssub.s32 %s10, 2
      // Predicated region
      $region45: #{tpu_custom_call.1} parent=43 // pred_check
        %p677 = pneg %p114
      $region46: #{tpu_custom_call.1} parent=43 // pred_check_branch
        %679 = sbr.rel (%p677) target = $region48
      $region47: #{tpu_custom_call.1} parent=43 // pred_region
        %s680 = smul.u32 8, %s24
        %p681 = scmp.lt.s32.totalorder %s23, 1
        %s682 = scalar_select %p681, %s23, 1
        %p683 = scmp.lt.s32.totalorder %s680, 7
        %s684 = scalar_select %p683, %s680, 7
        %s685 = smul.addr %s682, 8
        %s686 = sadd.s32 %s684, %s685
        %s687 = smul.addr %s686, 8
        %s688 = scalar_lea.vmem %s2, %s687
      $region48: #{tpu_custom_call.1} parent=43 // pred_fallthru
        _
      // Predicated region
      $region49: #{tpu_custom_call.1} parent=43 // pred_check
        %p689 = pneg %p142
      $region50: #{tpu_custom_call.1} parent=43 // pred_check_branch
        %691 = sbr.rel (%p689) target = $region52
      $region51: #{tpu_custom_call.1} parent=43 // pred_region
        %s692 = smul.u32 8, %s24
        %p693 = scmp.lt.s32.totalorder %s23, 1
        %s694 = scalar_select %p693, %s23, 1
        %p695 = scmp.lt.s32.totalorder %s692, 7
        %s696 = scalar_select %p695, %s692, 7
        %s697 = smul.addr %s694, 8
        %s698 = sadd.s32 %s696, %s697
        %s699 = smul.addr %s698, 8
        %s700 = scalar_lea.vmem %s3, %s699
      $region52: #{tpu_custom_call.1} parent=43 // pred_fallthru
        _
    $region44: #{tpu_custom_call.1} parent=5 // pred_fallthru
      _
  $region6: #{tpu_custom_call.1} parent=0 // loop_footer
    %s14 = sadd.s32 1, %s10
  $region7: #{tpu_custom_call.1} parent=0 // loop_footer_branch
    %9 = sbr.rel target = $region3
  $region8: #{tpu_custom_call.1} parent=0 // loop_exit
    _

</llo_original>
